<compile_context>
chip_gen: v7x
topology: tpu7x:2x2x1
jax: 0.10.0
libtpu: 0.0.40
codegen_flags: <defaults>
</compile_context>

<pallas_src>
import math
from functools import partial

import jax
import jax.numpy as jnp
from jax.experimental import pallas as pl
from jax.experimental.pallas import tpu as pltpu


def _flash_kernel(lens_ref, bias_ref, q_ref, k_ref, v_ref, o_ref,
                  m_scr, l_scr, acc_scr, *,
                  scale, causal, has_bias, seqlen_q, tm, tk):
    """Grid = (B, Hk, Mq_tiles, Sk_tiles); Sk_tiles is the innermost (arbitrary) axis.

    Shapes seen by the kernel (leading dims squeezed by the BlockSpecs):
      lens_ref: (B,)   int32 SMEM — effective key length per batch (scalar prefetch)
      bias_ref: (1, tk) f32       — additive key-padding bias tile (0 keep / -10000 mask)
      q_ref:    (tm, D)           — packed query rows (row = g*Sq + s, g-major)
      k_ref:    (tk, D)           — K tile of this KV head
      v_ref:    (tk, D)           — V tile of this KV head
      o_ref:    (tm, D)
      m_scr/l_scr: (tm, 1) f32, acc_scr: (tm, D) f32 — online-softmax state
    """
    kj = pl.program_id(3)

    @pl.when(kj == 0)
    def _init():
        m_scr[...] = jnp.full_like(m_scr, -jnp.inf)
        l_scr[...] = jnp.zeros_like(l_scr)
        acc_scr[...] = jnp.zeros_like(acc_scr)

    # Scale q (tm*D work), feed the MXU in native dtype with f32 accumulation;
    # rhs-contract dim 1 avoids materializing k^T.
    qs = q_ref[...] * jnp.asarray(scale, q_ref.dtype)                     # (tm, D)
    s = jax.lax.dot_general(qs, k_ref[...], (((1,), (1,)), ((), ())),
                            preferred_element_type=jnp.float32)           # (tm, tk)
    if has_bias:
        s = s + bias_ref[...]                                             # (1, tk) bcast

    if causal:
        b = pl.program_id(0)
        qi = pl.program_id(2)
        sk_eff = lens_ref[b]                                              # SMEM scalar
        r = jax.lax.broadcasted_iota(jnp.int32, (tm, tk), 0)
        # packed row index -> sequence position (packing is g-major blocks of Sq)
        row_pos = jax.lax.rem(qi * tm + r, seqlen_q)
        col_pos = kj * tk + jax.lax.broadcasted_iota(jnp.int32, (tm, tk), 1)
        s = jnp.where(col_pos > row_pos + (sk_eff - seqlen_q),
                      jnp.float32(-10000.0), s)

    # Online (flash) softmax update.
    m_prev = m_scr[...]
    m_new = jnp.maximum(m_prev, jnp.max(s, axis=-1, keepdims=True))
    alpha = jnp.exp(m_prev - m_new)
    p = jnp.exp(s - m_new)
    l_scr[...] = alpha * l_scr[...] + jnp.sum(p, axis=-1, keepdims=True)
    acc_scr[...] = alpha * acc_scr[...] + jax.lax.dot_general(
        p.astype(v_ref.dtype), v_ref[...], (((1,), (0,)), ((), ())),
        preferred_element_type=jnp.float32)                               # (tm, D)
    m_scr[...] = m_new

    # TODO(synk): attention_dropout > 0.0 (training mode) not implemented;
    # module default 0.0 is the identity.

    @pl.when(kj == pl.num_programs(3) - 1)
    def _finalize():
        # Exact division (not approx reciprocal) for parity with the reference.
        o_ref[...] = (acc_scr[...] / l_scr[...]).astype(o_ref.dtype)


def _pick_tile(n, align, target):
    """Largest tile <= target that divides n and is a multiple of align; else n."""
    if n <= target:
        return n
    t = (min(target, n) // align) * align
    while t >= align:
        if n % t == 0:
            return t
        t -= align
    return n


def cross_attention(q, kv, *, causal=False, softmax_scale=None, key_padding_mask=None):
    """q: (B, Sq, H, D), kv: (B, Sk, 2, H_k, D), key_padding_mask: (B, Sk) bool or None."""
    B, Sq, H, D = q.shape
    assert kv.shape[0] == B and kv.shape[2] == 2 and kv.shape[4] == D
    Sk, Hk = kv.shape[1], kv.shape[3]
    assert H % Hk == 0
    G = H // Hk
    Mp = G * Sq  # packed query rows per KV head (g-major)
    scale = float(softmax_scale) if softmax_scale is not None else 1.0 / math.sqrt(D)

    # One wrapper transpose each for q / kv / o: cheaper than per-step strided
    # slices and masked stores inside the kernel.
    #   q_p[b, hk, g*Sq + s, d] = q[b, s, hk*G + g, d]
    q_p = q.reshape(B, Sq, Hk, G, D).transpose(0, 2, 3, 1, 4).reshape(B, Hk, Mp, D)
    #   kv_t[b, slot, hk, s, d] = kv[b, s, slot, hk, d]  (contiguous per (slot, head))
    kv_t = kv.transpose(0, 2, 3, 1, 4)

    if key_padding_mask is None:
        has_bias = False
        bias = jnp.zeros((B, 1, Sk), jnp.float32)
        lens = jnp.full((B,), Sk, jnp.int32)
    else:
        has_bias = True
        bias = jnp.where(key_padding_mask, 0.0, -10000.0).astype(jnp.float32).reshape(B, 1, Sk)
        lens = key_padding_mask.sum(-1).astype(jnp.int32)

    # MXU-friendly tiles: packed-M tile targets 256 rows, Sk tile targets 512
    # (multiples of 128 when tiled); tiny test shapes fall back to full extents.
    tm = _pick_tile(Mp, 8, 256)
    tk = _pick_tile(Sk, 128, 512)
    grid = (B, Hk, Mp // tm, Sk // tk)

    kernel = partial(_flash_kernel, scale=scale, causal=bool(causal),
                     has_bias=has_bias, seqlen_q=Sq, tm=tm, tk=tk)

    grid_spec = pltpu.PrefetchScalarGridSpec(
        num_scalar_prefetch=1,
        grid=grid,
        in_specs=[
            # additive key-padding bias (B, 1, Sk) -> (1, tk)
            pl.BlockSpec((pl.Squeezed(), 1, tk),
                         lambda b, hk, qi, kj, lens: (b, 0, kj)),
            # packed q (B, Hk, Mp, D) -> (tm, D), lane/sublane-dense
            pl.BlockSpec((pl.Squeezed(), pl.Squeezed(), tm, D),
                         lambda b, hk, qi, kj, lens: (b, hk, qi, 0)),
            # k = kv_t[:, 0, hk] -> (tk, D)   (head + slot selected via index_map)
            pl.BlockSpec((pl.Squeezed(), pl.Squeezed(), pl.Squeezed(), tk, D),
                         lambda b, hk, qi, kj, lens: (b, 0, hk, kj, 0)),
            # v = kv_t[:, 1, hk] -> (tk, D)
            pl.BlockSpec((pl.Squeezed(), pl.Squeezed(), pl.Squeezed(), tk, D),
                         lambda b, hk, qi, kj, lens: (b, 1, hk, kj, 0)),
            # TODO(synk): consider pipeline_mode=pl.Buffered(3) on k/v for long Sk.
        ],
        out_specs=pl.BlockSpec((pl.Squeezed(), pl.Squeezed(), tm, D),
                               lambda b, hk, qi, kj, lens: (b, hk, qi, 0)),
        scratch_shapes=[
            pltpu.VMEM((tm, 1), jnp.float32),   # running max  m
            pltpu.VMEM((tm, 1), jnp.float32),   # running sum  l
            pltpu.VMEM((tm, D), jnp.float32),   # output accumulator
        ],
    )

    o_p = pl.pallas_call(
        kernel,
        out_shape=jax.ShapeDtypeStruct((B, Hk, Mp, D), q.dtype),
        grid_spec=grid_spec,
        compiler_params=pltpu.CompilerParams(
            dimension_semantics=("parallel", "parallel", "parallel", "arbitrary"),
            # Explicit budget: above v5e(16)/v6e(32) scoped defaults, within v7x's 64 MiB.
            vmem_limit_bytes=48 * 1024 * 1024,
        ),
    )(lens, bias, q_p, kv_t, kv_t)

    # Undo the packing: (B, Hk, G*Sq, D) -> (B, Sq, H, D)
    return o_p.reshape(B, Hk, G, Sq, D).transpose(0, 3, 1, 2, 4).reshape(B, Sq, H, D)


def _reference(q, kv, causal, softmax_scale, key_padding_mask):
    """Pure-JAX mirror of the PyTorch forward (for verification)."""
    B, Sq, H, D = q.shape
    Sk, Hk = kv.shape[1], kv.shape[3]
    if Hk != H:
        kv = jnp.repeat(kv, H // Hk, axis=3)
    k, v = kv[:, :, 0], kv[:, :, 1]
    scale = softmax_scale if softmax_scale is not None else 1.0 / math.sqrt(D)
    scores = jnp.einsum('bthd,bshd->bhts', q, k * scale)
    if key_padding_mask is not None:
        pad = jnp.where(key_padding_mask, 0.0, -10000.0).astype(scores.dtype)
        scores = scores + pad[:, None, None, :]
    if causal:
        row = jnp.arange(Sq)[:, None]
        col = jnp.arange(Sk)[None, :]
        if key_padding_mask is None:
            sk = jnp.full((B, 1, 1, 1), Sk)
        else:
            sk = key_padding_mask.sum(-1).reshape(B, 1, 1, 1)
        cmask = col[None, None] > (row[None, None] + sk - Sq)
        scores = jnp.where(cmask, -10000.0, scores)
    attn = jax.nn.softmax(scores, axis=-1).astype(v.dtype)
    return jnp.einsum('bhts,bshd->bthd', attn, v)


if __name__ == "__main__":
    key = jax.random.PRNGKey(0)
    k1, k2, k3 = jax.random.split(key, 3)

    B, Sq, Sk, H, Hk, D = 2, 8, 16, 4, 2, 32
    q = jax.random.normal(k1, (B, Sq, H, D), dtype=jnp.float32)
    kv = jax.random.normal(k2, (B, Sk, 2, Hk, D), dtype=jnp.float32)
    # deterministic padding mask: keep first 12 keys of batch 0, first 16 of batch 1
    lens = jnp.array([12, 16])
    key_padding_mask = jnp.arange(Sk)[None, :] < lens[:, None]

    TOL = 2e-3

    # causal + key padding mask + GQA
    out = jax.block_until_ready(cross_attention(q, kv, causal=True,
                                                key_padding_mask=key_padding_mask))
    ref = _reference(q, kv, True, None, key_padding_mask)
    assert out.shape == (B, Sq, H, D)
    assert jnp.allclose(out, ref, atol=TOL, rtol=TOL), float(jnp.max(jnp.abs(out - ref)))

    # non-causal, no mask
    out2 = jax.block_until_ready(cross_attention(q, kv, causal=False))
    ref2 = _reference(q, kv, False, None, None)
    assert jnp.allclose(out2, ref2, atol=TOL, rtol=TOL), float(jnp.max(jnp.abs(out2 - ref2)))

    # MHA path (Hk == H, no grouping) with explicit softmax scale
    kv_mha = jax.random.normal(k3, (B, Sk, 2, H, D), dtype=jnp.float32)
    out3 = jax.block_until_ready(cross_attention(q, kv_mha, causal=True, softmax_scale=0.2,
                                                 key_padding_mask=key_padding_mask))
    ref3 = _reference(q, kv_mha, True, 0.2, key_padding_mask)
    assert jnp.allclose(out3, ref3, atol=TOL, rtol=TOL), float(jnp.max(jnp.abs(out3 - ref3)))

    print("KERNEL_OK")
</pallas_src>

<mosaic_0001>
module attributes {stable_mosaic.version = 11 : i64} {
  func.func @_flash_kernel(%arg0: i32, %arg1: i32, %arg2: i32, %arg3: i32, %arg4: memref<2xi32, #tpu.memory_space<smem>>, %arg5: memref<1x1x16xf32, #tpu.memory_space<vmem>>, %arg6: memref<1x1x16x32xf32, #tpu.memory_space<vmem>>, %arg7: memref<1x1x1x16x32xf32, #tpu.memory_space<vmem>>, %arg8: memref<1x1x1x16x32xf32, #tpu.memory_space<vmem>>, %arg9: memref<1x1x16x32xf32, #tpu.memory_space<vmem>>, %arg10: memref<16x1xf32, #tpu.memory_space<vmem>>, %arg11: memref<16x1xf32, #tpu.memory_space<vmem>>, %arg12: memref<16x32xf32, #tpu.memory_space<vmem>>) attributes {dimension_semantics = [#tpu.dimension_semantics<parallel>, #tpu.dimension_semantics<parallel>, #tpu.dimension_semantics<parallel>, #tpu.dimension_semantics<arbitrary>], iteration_bounds = array<i64: 2, 2, 1, 1>, scalar_prefetch = 1 : i64, scratch_operands = 3 : i64, tpu.core_type = #tpu.core_type<tc>, window_params = [{transform_indices = @transform_0, window_bounds = array<i64: 1, 1, 16>}, {transform_indices = @transform_1, window_bounds = array<i64: 1, 1, 16, 32>}, {transform_indices = @transform_2, window_bounds = array<i64: 1, 1, 1, 16, 32>}, {transform_indices = @transform_3, window_bounds = array<i64: 1, 1, 1, 16, 32>}, {transform_indices = @transform_4, window_bounds = array<i64: 1, 1, 16, 32>}]} {
    %c0_i32 = arith.constant 0 : i32
    %0 = arith.cmpi eq, %arg3, %c0_i32 : i32
    %1 = arith.extui %0 : i1 to i32
    %c0_i32_0 = arith.constant 0 : i32
    %2 = arith.cmpi ne, %1, %c0_i32_0 : i32
    scf.if %2 {
      %cst_38 = arith.constant 0xFF800000 : f32
      %59 = vector.broadcast %cst_38 : f32 to vector<16x1xf32>
      %c0_39 = arith.constant 0 : index
      %c0_40 = arith.constant 0 : index
      %60 = vector.load %arg10[%c0_39, %c0_40] : memref<16x1xf32, #tpu.memory_space<vmem>>, vector<16x1xf32>
      tpu.vector_store %arg10[%c0_39, %c0_40], %59 {strides = array<i32>} : memref<16x1xf32, #tpu.memory_space<vmem>>, vector<16x1xf32>,
      %cst_41 = arith.constant 0.000000e+00 : f32
      %61 = vector.broadcast %cst_41 : f32 to vector<16x1xf32>
      %c0_42 = arith.constant 0 : index
      %c0_43 = arith.constant 0 : index
      %62 = vector.load %arg11[%c0_42, %c0_43] : memref<16x1xf32, #tpu.memory_space<vmem>>, vector<16x1xf32>
      tpu.vector_store %arg11[%c0_42, %c0_43], %61 {strides = array<i32>} : memref<16x1xf32, #tpu.memory_space<vmem>>, vector<16x1xf32>,
      %cst_44 = arith.constant 0.000000e+00 : f32
      %63 = vector.broadcast %cst_44 : f32 to vector<16x32xf32>
      %c0_45 = arith.constant 0 : index
      %c0_46 = arith.constant 0 : index
      %64 = vector.load %arg12[%c0_45, %c0_46] : memref<16x32xf32, #tpu.memory_space<vmem>>, vector<16x32xf32>
      tpu.vector_store %arg12[%c0_45, %c0_46], %63 {strides = array<i32>} : memref<16x32xf32, #tpu.memory_space<vmem>>, vector<16x32xf32>,
    } else {
    }
    %c0 = arith.constant 0 : index
    %c0_1 = arith.constant 0 : index
    %c0_2 = arith.constant 0 : index
    %c0_3 = arith.constant 0 : index
    %3 = vector.load %arg6[%c0, %c0_1, %c0_2, %c0_3] : memref<1x1x16x32xf32, #tpu.memory_space<vmem>>, vector<1x1x16x32xf32>
    %4 = vector.shape_cast %3 : vector<1x1x16x32xf32> to vector<16x32xf32>
    %cst = arith.constant 0.176776692 : f32
    %5 = vector.broadcast %cst : f32 to vector<16x32xf32>
    %6 = arith.mulf %4, %5 : vector<16x32xf32>
    %c0_4 = arith.constant 0 : index
    %c0_5 = arith.constant 0 : index
    %c0_6 = arith.constant 0 : index
    %c0_7 = arith.constant 0 : index
    %c0_8 = arith.constant 0 : index
    %7 = vector.load %arg7[%c0_4, %c0_5, %c0_6, %c0_7, %c0_8] : memref<1x1x1x16x32xf32, #tpu.memory_space<vmem>>, vector<1x1x1x16x32xf32>
    %8 = vector.shape_cast %7 : vector<1x1x1x16x32xf32> to vector<16x32xf32>
    %cst_9 = arith.constant dense<0.000000e+00> : vector<16x16xf32>
    %9 = tpu.matmul %6, %8, %cst_9 {dimension_numbers = #tpu.dot_dimension_numbers<[1], [1], [0], [0], [0, 0, 1, 0], [], []>} : vector<16x32xf32>, vector<16x32xf32>, vector<16x16xf32> -> vector<16x16xf32>
    %c0_10 = arith.constant 0 : index
    %c0_11 = arith.constant 0 : index
    %c0_12 = arith.constant 0 : index
    %10 = vector.load %arg5[%c0_10, %c0_11, %c0_12] : memref<1x1x16xf32, #tpu.memory_space<vmem>>, vector<1x1x16xf32>
    %11 = vector.shape_cast %10 : vector<1x1x16xf32> to vector<1x16xf32>
    %12 = vector.broadcast %11 : vector<1x16xf32> to vector<16x16xf32>
    %13 = arith.addf %9, %12 : vector<16x16xf32>
    %14 = arith.index_cast %arg0 : i32 to index
    %15 = memref.load %arg4[%14] : memref<2xi32, #tpu.memory_space<smem>>
    %16 = tpu.iota {dimensions = array<i32: 0>} : vector<16x16xi32>
    %c16_i32 = arith.constant 16 : i32
    %17 = arith.muli %arg2, %c16_i32 : i32
    %18 = vector.broadcast %17 : i32 to vector<16x16xi32>
    %19 = arith.addi %18, %16 : vector<16x16xi32>
    %c8_i32 = arith.constant 8 : i32
    %20 = vector.broadcast %c8_i32 : i32 to vector<16x16xi32>
    %21 = arith.remsi %19, %20 : vector<16x16xi32>
    %c16_i32_13 = arith.constant 16 : i32
    %22 = arith.muli %arg3, %c16_i32_13 : i32
    %23 = tpu.iota {dimensions = array<i32: 1>} : vector<16x16xi32>
    %24 = vector.broadcast %22 : i32 to vector<16x16xi32>
    %25 = arith.addi %24, %23 : vector<16x16xi32>
    %c8_i32_14 = arith.constant 8 : i32
    %26 = arith.subi %15, %c8_i32_14 : i32
    %27 = vector.broadcast %26 : i32 to vector<16x16xi32>
    %28 = arith.addi %21, %27 : vector<16x16xi32>
    %29 = arith.cmpi sgt, %25, %28 : vector<16x16xi32>
    %cst_15 = arith.constant -1.000000e+04 : f32
    %30 = vector.broadcast %cst_15 : f32 to vector<16x16xf32>
    %31 = arith.select %29, %30, %13 : vector<16x16xi1>, vector<16x16xf32>
    %c0_16 = arith.constant 0 : index
    %c0_17 = arith.constant 0 : index
    %32 = vector.load %arg10[%c0_16, %c0_17] : memref<16x1xf32, #tpu.memory_space<vmem>>, vector<16x1xf32>
    %cst_18 = arith.constant dense<0xFF800000> : vector<16xf32>
    %33 = vector.multi_reduction <maximumf>, %31, %cst_18 [1] : vector<16x16xf32> to vector<16xf32>
    %34 = vector.shape_cast %33 : vector<16xf32> to vector<16x1xf32>
    %35 = arith.maximumf %32, %34 : vector<16x1xf32>
    %36 = arith.subf %32, %35 : vector<16x1xf32>
    %37 = math.exp %36 : vector<16x1xf32>
    %38 = vector.broadcast %35 : vector<16x1xf32> to vector<16x16xf32>
    %39 = arith.subf %31, %38 : vector<16x16xf32>
    %40 = math.exp %39 : vector<16x16xf32>
    %c0_19 = arith.constant 0 : index
    %c0_20 = arith.constant 0 : index
    %41 = vector.load %arg11[%c0_19, %c0_20] : memref<16x1xf32, #tpu.memory_space<vmem>>, vector<16x1xf32>
    %42 = arith.mulf %37, %41 : vector<16x1xf32>
    %cst_21 = arith.constant dense<0.000000e+00> : vector<16xf32>
    %43 = vector.multi_reduction <add>, %40, %cst_21 [1] : vector<16x16xf32> to vector<16xf32>
    %44 = vector.shape_cast %43 : vector<16xf32> to vector<16x1xf32>
    %45 = arith.addf %42, %44 : vector<16x1xf32>
    %c0_22 = arith.constant 0 : index
    %c0_23 = arith.constant 0 : index
    %46 = vector.load %arg11[%c0_22, %c0_23] : memref<16x1xf32, #tpu.memory_space<vmem>>, vector<16x1xf32>
    tpu.vector_store %arg11[%c0_22, %c0_23], %45 {strides = array<i32>} : memref<16x1xf32, #tpu.memory_space<vmem>>, vector<16x1xf32>,
    %c0_24 = arith.constant 0 : index
    %c0_25 = arith.constant 0 : index
    %47 = vector.load %arg12[%c0_24, %c0_25] : memref<16x32xf32, #tpu.memory_space<vmem>>, vector<16x32xf32>
    %48 = vector.broadcast %37 : vector<16x1xf32> to vector<16x32xf32>
    %49 = arith.mulf %48, %47 : vector<16x32xf32>
    %c0_26 = arith.constant 0 : index
    %c0_27 = arith.constant 0 : index
    %c0_28 = arith.constant 0 : index
    %c0_29 = arith.constant 0 : index
    %c0_30 = arith.constant 0 : index
    %50 = vector.load %arg8[%c0_26, %c0_27, %c0_28, %c0_29, %c0_30] : memref<1x1x1x16x32xf32, #tpu.memory_space<vmem>>, vector<1x1x1x16x32xf32>
    %51 = vector.shape_cast %50 : vector<1x1x1x16x32xf32> to vector<16x32xf32>
    %cst_31 = arith.constant dense<0.000000e+00> : vector<16x32xf32>
    %52 = tpu.matmul %40, %51, %cst_31 {dimension_numbers = #tpu.dot_dimension_numbers<[1], [0], [0], [1], [0, 0, 1, 1], [], []>} : vector<16x16xf32>, vector<16x32xf32>, vector<16x32xf32> -> vector<16x32xf32>
    %53 = arith.addf %49, %52 : vector<16x32xf32>
    %c0_32 = arith.constant 0 : index
    %c0_33 = arith.constant 0 : index
    %54 = vector.load %arg12[%c0_32, %c0_33] : memref<16x32xf32, #tpu.memory_space<vmem>>, vector<16x32xf32>
    tpu.vector_store %arg12[%c0_32, %c0_33], %53 {strides = array<i32>} : memref<16x32xf32, #tpu.memory_space<vmem>>, vector<16x32xf32>,
    %c0_34 = arith.constant 0 : index
    %c0_35 = arith.constant 0 : index
    %55 = vector.load %arg10[%c0_34, %c0_35] : memref<16x1xf32, #tpu.memory_space<vmem>>, vector<16x1xf32>
    tpu.vector_store %arg10[%c0_34, %c0_35], %35 {strides = array<i32>} : memref<16x1xf32, #tpu.memory_space<vmem>>, vector<16x1xf32>,
    %c0_i32_36 = arith.constant 0 : i32
    %56 = arith.cmpi eq, %arg3, %c0_i32_36 : i32
    %57 = arith.extui %56 : i1 to i32
    %c0_i32_37 = arith.constant 0 : i32
    %58 = arith.cmpi ne, %57, %c0_i32_37 : i32
    scf.if %58 {
      %c0_38 = arith.constant 0 : index
      %c0_39 = arith.constant 0 : index
      %59 = vector.load %arg12[%c0_38, %c0_39] : memref<16x32xf32, #tpu.memory_space<vmem>>, vector<16x32xf32>
      %c0_40 = arith.constant 0 : index
      %c0_41 = arith.constant 0 : index
      %60 = vector.load %arg11[%c0_40, %c0_41] : memref<16x1xf32, #tpu.memory_space<vmem>>, vector<16x1xf32>
      %61 = vector.broadcast %60 : vector<16x1xf32> to vector<16x32xf32>
      %62 = arith.divf %59, %61 : vector<16x32xf32>
      %c0_42 = arith.constant 0 : index
      %c0_43 = arith.constant 0 : index
      %c0_44 = arith.constant 0 : index
      %c0_45 = arith.constant 0 : index
      %63 = vector.load %arg9[%c0_42, %c0_43, %c0_44, %c0_45] : memref<1x1x16x32xf32, #tpu.memory_space<vmem>>, vector<1x1x16x32xf32>
      %64 = vector.shape_cast %63 : vector<1x1x16x32xf32> to vector<16x32xf32>
      %65 = vector.shape_cast %62 : vector<16x32xf32> to vector<1x1x16x32xf32>
      tpu.vector_store %arg9[%c0_42, %c0_43, %c0_44, %c0_45], %65 {strides = array<i32>} : memref<1x1x16x32xf32, #tpu.memory_space<vmem>>, vector<1x1x16x32xf32>,
    } else {
    }
    return
  }
  func.func @transform_0(%arg0: i32, %arg1: i32, %arg2: i32, %arg3: i32, %arg4: memref<2xi32, #tpu.memory_space<smem>>) -> (i32, i32, i32) {
    %c0_i32 = arith.constant 0 : i32
    %c0_i32_0 = arith.constant 0 : i32
    return %arg0, %c0_i32, %arg3 : i32, i32, i32
  }
  func.func @transform_1(%arg0: i32, %arg1: i32, %arg2: i32, %arg3: i32, %arg4: memref<2xi32, #tpu.memory_space<smem>>) -> (i32, i32, i32, i32) {
    %c0_i32 = arith.constant 0 : i32
    %c0_i32_0 = arith.constant 0 : i32
    return %arg0, %arg1, %arg2, %c0_i32 : i32, i32, i32, i32
  }
  func.func @transform_2(%arg0: i32, %arg1: i32, %arg2: i32, %arg3: i32, %arg4: memref<2xi32, #tpu.memory_space<smem>>) -> (i32, i32, i32, i32, i32) {
    %c0_i32 = arith.constant 0 : i32
    %c0_i32_0 = arith.constant 0 : i32
    %c0_i32_1 = arith.constant 0 : i32
    return %arg0, %c0_i32, %arg1, %arg3, %c0_i32_0 : i32, i32, i32, i32, i32
  }
  func.func @transform_3(%arg0: i32, %arg1: i32, %arg2: i32, %arg3: i32, %arg4: memref<2xi32, #tpu.memory_space<smem>>) -> (i32, i32, i32, i32, i32) {
    %c1_i32 = arith.constant 1 : i32
    %c0_i32 = arith.constant 0 : i32
    %c0_i32_0 = arith.constant 0 : i32
    return %arg0, %c1_i32, %arg1, %arg3, %c0_i32 : i32, i32, i32, i32, i32
  }
  func.func @transform_4(%arg0: i32, %arg1: i32, %arg2: i32, %arg3: i32, %arg4: memref<2xi32, #tpu.memory_space<smem>>) -> (i32, i32, i32, i32) {
    %c0_i32 = arith.constant 0 : i32
    %c0_i32_0 = arith.constant 0 : i32
    return %arg0, %arg1, %arg2, %c0_i32 : i32, i32, i32, i32
  }
}

</mosaic_0001>

<llo_original>
// kernel: tpu_custom_call.1
$region0: #{tpu_custom_call.1}
  #allocation0 [shape = 'u32[]', space=smem, size = 0x4, offset = 0x4, fixed_abs, tag = 'smem constant byte address 0x4 - core index']
  #allocation1 [shape = 'u32[144,128]{1,0:T(1,128)}', space=vmem, size = 0x12000, scoped, tag = 'internal scratch']
  #allocation2 [shape = 'f32[16,1]{1,0:T(8,128)}', space=vmem, size = 0x2000, scoped, tag = 'scratch operand']
  #allocation3 [shape = 'f32[16,1]{1,0:T(8,128)}', space=vmem, size = 0x2000, scoped, tag = 'scratch operand']
  #allocation4 [shape = 'f32[16,32]{1,0:T(8,128)}', space=vmem, size = 0x2000, scoped, tag = 'scratch operand']
  #allocation5 [shape = 's32[1]{0}', space=sflag, size = 0x4, scoped, tag = 'scoped memory for tpu_custom_call.1']
  #allocation6 [shape = 'u8[512]{0}', space=smem, size = 0x200, scoped, tag = 'prefetched SMEM operand 0']
  %s0 = inlined_call_operand.hbm [shape: s32[2], index: 0, kind: input, shape index: {}]
  %s1 = inlined_call_operand.vmem [shape: f32[2,1,16], index: 1, kind: input, shape index: {}]
  %s2 = inlined_call_operand.hbm [shape: f32[2,2,16,32], index: 2, kind: input, shape index: {}]
  %s3 = inlined_call_operand.hbm [shape: f32[2,2,2,16,32], index: 3, kind: input, shape index: {}]
  %s4 = inlined_call_operand.hbm [shape: f32[2,2,2,16,32], index: 4, kind: input, shape index: {}]
  %s5 = inlined_call_operand.hbm [shape: f32[2,2,16,32], index: 5, kind: output, shape index: {}]
  %s6 = sld [smem:[#allocation0]]
  $region69: #{tpu_custom_call.1} parent=0
    _
  %s8 = ssub.s32 1, %s6
  %s9 = scalar_select 0, %s8, %s6
  %11 = dma.hbm_to_smem %s0, 16, [#allocation6], [#allocation5]
  %12 = dma.done [#allocation5], 16
  %13 = sfence
  $region1: #{tpu_custom_call.1} parent=0
    #allocation7 [shape = 'u8[16384]{0}', space=vmem, size = 0x4000, scoped, tag = 'input window, operand 2']
    #allocation8 [shape = 's32[2]{0}', space=sflag, size = 0x8, scoped, tag = 'scoped memory for tpu_custom_call.1']
    #allocation9 [shape = 's32[2]{0}', space=sflag, size = 0x8, scoped, tag = 'scoped memory for tpu_custom_call.1']
    #allocation10 [shape = 'u8[16384]{0}', space=vmem, size = 0x4000, scoped, tag = 'input window, operand 3']
    #allocation11 [shape = 's32[2]{0}', space=sflag, size = 0x8, scoped, tag = 'scoped memory for tpu_custom_call.1']
    #allocation12 [shape = 'u8[16384]{0}', space=vmem, size = 0x4000, scoped, tag = 'input window, operand 4']
    #allocation13 [shape = 'u8[16384]{0}', space=vmem, size = 0x4000, scoped, tag = 'output window, operand 0']
    %14 = vsyncpa [#allocation8], 0
    %s15 = scalar_lea.sflag [#allocation8], 1
    %16 = vsyncpa %s15, 0
    %17 = vsyncpa [#allocation11], 0
    %s18 = scalar_lea.sflag [#allocation11], 1
    %19 = vsyncpa %s18, 0
    %20 = vsyncpa [#allocation9], 0
    %s21 = scalar_lea.sflag [#allocation9], 1
    %22 = vsyncpa %s21, 0
    loop: start=0, step=1, limit=6
    $region2: #{tpu_custom_call.1} parent=1 // loop_pre_header
      _
    $region3: #{tpu_custom_call.1} parent=1 // loop_header
      %s24 = sphi 0, %s28
      %p25 = scmp.ge.s32.totalorder %s24, 6
      %s31 = sphi 0, %s57
      %s32 = sphi 0, %s53
      %s33 = sphi 0, %s49
      %s34 = sphi 0, %s45
      %s35 = sphi 0, %s31
      %s36 = sphi 0, %s32
      %s37 = sphi 0, %s33
      %s38 = sphi 0, %s34
      %s39 = sphi 0, %s35
      %s40 = sphi 0, %s36
      %s41 = sphi 0, %s37
      %s42 = sphi 0, %s38
      %s62 = sphi 0, %s64
      %s65 = sphi 0, %s62
      %s66 = sphi 0, %s65
      %s82 = sphi 0, %s66
      %s92 = sphi 0, %s94
      %s95 = sphi 0, %s92
      %s96 = sphi 0, %s95
      %s112 = sphi 0, %s96
      %s122 = sphi 0, %s124
      %s125 = sphi 0, %s122
      %s126 = sphi 0, %s125
      %s142 = sphi 0, %s126
      %s152 = sphi 0, %s154
      %s155 = sphi 0, %s152
      %s156 = sphi 0, %s155
      %s172 = sphi 0, %s156
      %s182 = sphi 0, %s184
      %s185 = sphi 0, %s182
      %s186 = sphi 0, %s185
      %s202 = sphi 0, %s186
    $region4: #{tpu_custom_call.1} parent=1 // loop_header_branch
      %27 = sbr.rel (%p25) target = $region8
    $region5: #{tpu_custom_call.1} parent=1 // loop_body
      %s29 = ssub.s32 %s24, 1
      %s30 = ssub.s32 %s24, 2
      %s43 = sadd.s32 1, %s34
      %p44 = scmp.ge.s32.totalorder %s43, 1
      %s45 = scalar_select %p44, 0, %s43
      %s46 = sadd.s32 1, %s33
      %s47 = scalar_select %p44, %s46, %s33
      %p48 = scmp.ge.s32.totalorder %s47, 1
      %s49 = scalar_select %p48, 0, %s47
      %s50 = sadd.s32 1, %s32
      %s51 = scalar_select %p48, %s50, %s32
      %p52 = scmp.ge.s32.totalorder %s51, 2
      %s53 = scalar_select %p52, 0, %s51
      %s54 = sadd.s32 1, %s31
      %s55 = scalar_select %p52, %s54, %s31
      %p56 = scmp.ge.s32.totalorder %s55, 2
      %s57 = scalar_select %p56, 0, %s55
      %s58 = ssub.s32 %s31, %s57
      %s59 = ssub.s32 %s34, %s45
      %s60 = sor.u32 %s58, %s59
      %p61 = scmp.eq.s32.totalorder %s60, 0
      %s63 = sadd.s32 %s62, 1
      %s64 = scalar_select %p61, %s62, %s63
      %p67 = pneg %p61
      %p68 = scmp.eq.s32.totalorder %s24, 3
      %p69 = por %p67, %p68
      %p70 = scmp.ne.s32.totalorder %s62, %s65
      %p71 = scmp.eq.s32.totalorder %s24, 0
      %p72 = por %p70, %p71
      %p73 = scmp.ne.s32.totalorder %s62, %s65
      %p74 = scmp.eq.s32.totalorder %s29, 3
      %p75 = por %p73, %p74
      %p76 = scmp.ne.s32.totalorder %s65, %s66
      %p77 = scmp.eq.s32.totalorder %s29, 0
      %p78 = por %p76, %p77
      %p79 = scmp.ne.s32.totalorder %s65, %s66
      %p80 = scmp.eq.s32.totalorder %s30, 3
      %p81 = por %p79, %p80
      %p83 = scmp.ne.s32.totalorder %s66, %s82
      %p84 = scmp.eq.s32.totalorder %s30, 0
      %p85 = por %p83, %p84
      %s86 = ssub.s32 %s31, %s57
      %s87 = ssub.s32 %s32, %s53
      %s88 = sor.u32 %s86, %s87
      %s89 = ssub.s32 %s33, %s49
      %s90 = sor.u32 %s88, %s89
      %p91 = scmp.eq.s32.totalorder %s90, 0
      %s93 = sadd.s32 %s92, 1
      %s94 = scalar_select %p91, %s92, %s93
      %p97 = pneg %p91
      %p98 = scmp.eq.s32.totalorder %s24, 3
      %p99 = por %p97, %p98
      %p100 = scmp.ne.s32.totalorder %s92, %s95
      %p101 = scmp.eq.s32.totalorder %s24, 0
      %p102 = por %p100, %p101
      %p103 = scmp.ne.s32.totalorder %s92, %s95
      %p104 = scmp.eq.s32.totalorder %s29, 3
      %p105 = por %p103, %p104
      %p106 = scmp.ne.s32.totalorder %s95, %s96
      %p107 = scmp.eq.s32.totalorder %s29, 0
      %p108 = por %p106, %p107
      %p109 = scmp.ne.s32.totalorder %s95, %s96
      %p110 = scmp.eq.s32.totalorder %s30, 3
      %p111 = por %p109, %p110
      %p113 = scmp.ne.s32.totalorder %s96, %s112
      %p114 = scmp.eq.s32.totalorder %s30, 0
      %p115 = por %p113, %p114
      %s116 = ssub.s32 %s31, %s57
      %s117 = ssub.s32 %s32, %s53
      %s118 = sor.u32 %s116, %s117
      %s119 = ssub.s32 %s34, %s45
      %s120 = sor.u32 %s118, %s119
      %p121 = scmp.eq.s32.totalorder %s120, 0
      %s123 = sadd.s32 %s122, 1
      %s124 = scalar_select %p121, %s122, %s123
      %p127 = pneg %p121
      %p128 = scmp.eq.s32.totalorder %s24, 3
      %p129 = por %p127, %p128
      %p130 = scmp.ne.s32.totalorder %s122, %s125
      %p131 = scmp.eq.s32.totalorder %s24, 0
      %p132 = por %p130, %p131
      %p133 = scmp.ne.s32.totalorder %s122, %s125
      %p134 = scmp.eq.s32.totalorder %s29, 3
      %p135 = por %p133, %p134
      %p136 = scmp.ne.s32.totalorder %s125, %s126
      %p137 = scmp.eq.s32.totalorder %s29, 0
      %p138 = por %p136, %p137
      %p139 = scmp.ne.s32.totalorder %s125, %s126
      %p140 = scmp.eq.s32.totalorder %s30, 3
      %p141 = por %p139, %p140
      %p143 = scmp.ne.s32.totalorder %s126, %s142
      %p144 = scmp.eq.s32.totalorder %s30, 0
      %p145 = por %p143, %p144
      %s146 = ssub.s32 %s31, %s57
      %s147 = ssub.s32 %s32, %s53
      %s148 = sor.u32 %s146, %s147
      %s149 = ssub.s32 %s34, %s45
      %s150 = sor.u32 %s148, %s149
      %p151 = scmp.eq.s32.totalorder %s150, 0
      %s153 = sadd.s32 %s152, 1
      %s154 = scalar_select %p151, %s152, %s153
      %p157 = pneg %p151
      %p158 = scmp.eq.s32.totalorder %s24, 3
      %p159 = por %p157, %p158
      %p160 = scmp.ne.s32.totalorder %s152, %s155
      %p161 = scmp.eq.s32.totalorder %s24, 0
      %p162 = por %p160, %p161
      %p163 = scmp.ne.s32.totalorder %s152, %s155
      %p164 = scmp.eq.s32.totalorder %s29, 3
      %p165 = por %p163, %p164
      %p166 = scmp.ne.s32.totalorder %s155, %s156
      %p167 = scmp.eq.s32.totalorder %s29, 0
      %p168 = por %p166, %p167
      %p169 = scmp.ne.s32.totalorder %s155, %s156
      %p170 = scmp.eq.s32.totalorder %s30, 3
      %p171 = por %p169, %p170
      %p173 = scmp.ne.s32.totalorder %s156, %s172
      %p174 = scmp.eq.s32.totalorder %s30, 0
      %p175 = por %p173, %p174
      %s176 = ssub.s32 %s31, %s57
      %s177 = ssub.s32 %s32, %s53
      %s178 = sor.u32 %s176, %s177
      %s179 = ssub.s32 %s33, %s49
      %s180 = sor.u32 %s178, %s179
      %p181 = scmp.eq.s32.totalorder %s180, 0
      %s183 = sadd.s32 %s182, 1
      %s184 = scalar_select %p181, %s182, %s183
      %p187 = pneg %p181
      %p188 = scmp.eq.s32.totalorder %s24, 3
      %p189 = por %p187, %p188
      %p190 = scmp.ne.s32.totalorder %s182, %s185
      %p191 = scmp.eq.s32.totalorder %s24, 0
      %p192 = por %p190, %p191
      %p193 = scmp.ne.s32.totalorder %s182, %s185
      %p194 = scmp.eq.s32.totalorder %s29, 3
      %p195 = por %p193, %p194
      %p196 = scmp.ne.s32.totalorder %s185, %s186
      %p197 = scmp.eq.s32.totalorder %s29, 0
      %p198 = por %p196, %p197
      %p199 = scmp.ne.s32.totalorder %s185, %s186
      %p200 = scmp.eq.s32.totalorder %s30, 3
      %p201 = por %p199, %p200
      %p203 = scmp.ne.s32.totalorder %s186, %s202
      %p204 = scmp.eq.s32.totalorder %s30, 0
      %p205 = por %p203, %p204
      %p206 = scmp.le.s32.totalorder 1, %s24
      %p207 = scmp.lt.s32.totalorder %s24, 5
      %p208 = pnand %p206, %p207
      %p209 = pneg %p208
      // Predicated region
      $region9: #{tpu_custom_call.1} parent=5 // pred_check
        _
      $region10: #{tpu_custom_call.1} parent=5 // pred_check_branch
        %211 = sbr.rel (%p208) target = $region12
      $region11: #{tpu_custom_call.1} parent=5 // pred_region
        %s212 = ssub.s32 %s24, 1
      $region12: #{tpu_custom_call.1} parent=5 // pred_fallthru
        _
      %p213 = scmp.lt.s32.totalorder %s24, 4
      // Predicated region
      $region13: #{tpu_custom_call.1} parent=5 // pred_check
        %p214 = pneg %p213
      $region14: #{tpu_custom_call.1} parent=5 // pred_check_branch
        %216 = sbr.rel (%p214) target = $region16
      $region15: #{tpu_custom_call.1} parent=5 // pred_region
        // Predicated region
        $region17: #{tpu_custom_call.1} parent=15 // pred_check
          %p217 = pneg %p72
        $region18: #{tpu_custom_call.1} parent=15 // pred_check_branch
          %219 = sbr.rel (%p217) target = $region20
        $region19: #{tpu_custom_call.1} parent=15 // pred_region
          %p220 = scmp.lt.s32.totalorder %s31, 1
          %s221 = scalar_select %p220, %s31, 1
          %p222 = scmp.lt.s32.totalorder %s34, 0
          %s223 = scalar_select %p222, %s34, 0
          %s224 = sadd.s32 %s223, %s221
          %s225 = scalar_lea.vmem %s1, %s224
        $region20: #{tpu_custom_call.1} parent=15 // pred_fallthru
          _
        // Predicated region
        $region21: #{tpu_custom_call.1} parent=15 // pred_check
          %p226 = pneg %p102
        $region22: #{tpu_custom_call.1} parent=15 // pred_check_branch
          %228 = sbr.rel (%p226) target = $region24
        $region23: #{tpu_custom_call.1} parent=15 // pred_region
          %s229 = sand.u32 %s92, 1
          %s230 = scalar_lea.sflag [#allocation8], %s229
          %s231 = sand.u32 %s92, 1
          %s232 = smul.addr %s231, 16
          %s233 = scalar_lea.vmem [#allocation7], %s232
          %s234 = smul.u32 2, %s33
          %s236 = ssub.s32 256, 256
          %237 = vsyncadd %s230, %s236
          %s238 = smul.addr %s32, 2
          %s239 = sadd.s32 %s234, %s238
          %s240 = smul.addr %s31, 4
          %s241 = sadd.s32 %s239, %s240
          %s242 = smul.addr %s241, 128
          %s243 = scalar_lea.hbm %s2, %s242
          %s244 = sshll.u32 %s233, 4
          %s245 = int_to_ptr.vmem [resolvable:$true] %s244
          %250 = dma.hbm_to_vmem [thread:$0]  %s243, 256, %s245, %s230, 128, 128, 8
        $region24: #{tpu_custom_call.1} parent=15 // pred_fallthru
          _
        // Predicated region
        $region25: #{tpu_custom_call.1} parent=15 // pred_check
          %p251 = pneg %p132
        $region26: #{tpu_custom_call.1} parent=15 // pred_check_branch
          %253 = sbr.rel (%p251) target = $region28
        $region27: #{tpu_custom_call.1} parent=15 // pred_region
          %s254 = sand.u32 %s24, 1
          %s255 = scalar_lea.sflag [#allocation11], %s254
          %s256 = sand.u32 %s122, 1
          %s257 = smul.addr %s256, 16
          %s258 = scalar_lea.vmem [#allocation10], %s257
          %s259 = smul.u32 2, %s34
          %s261 = ssub.s32 256, 256
          %262 = vsyncadd %s255, %s261
          %s263 = smul.addr %s32, 2
          %s264 = sadd.s32 %s259, %s263
          %s265 = smul.addr %s31, 8
          %s266 = sadd.s32 %s264, %s265
          %s267 = smul.addr %s266, 128
          %s268 = scalar_lea.hbm %s3, %s267
          %s269 = sshll.u32 %s258, 4
          %s270 = int_to_ptr.vmem [resolvable:$true] %s269
          %275 = dma.hbm_to_vmem [thread:$0]  %s268, 256, %s270, %s255, 128, 128, 8
        $region28: #{tpu_custom_call.1} parent=15 // pred_fallthru
          _
        // Predicated region
        $region29: #{tpu_custom_call.1} parent=15 // pred_check
          %p276 = pneg %p162
        $region30: #{tpu_custom_call.1} parent=15 // pred_check_branch
          %278 = sbr.rel (%p276) target = $region32
        $region31: #{tpu_custom_call.1} parent=15 // pred_region
          %s279 = sand.u32 %s24, 1
          %s280 = scalar_lea.sflag [#allocation11], %s279
          %s281 = sand.u32 %s152, 1
          %s282 = smul.addr %s281, 16
          %s283 = scalar_lea.vmem [#allocation12], %s282
          %s284 = smul.u32 2, %s34
          %s286 = ssub.s32 256, 256
          %287 = vsyncadd %s280, %s286
          %s288 = smul.addr %s32, 2
          %s289 = sadd.s32 %s284, %s288
          %s290 = sadd.s32 %s289, 4
          %s291 = smul.addr %s31, 8
          %s292 = sadd.s32 %s290, %s291
          %s293 = smul.addr %s292, 128
          %s294 = scalar_lea.hbm %s4, %s293
          %s295 = sshll.u32 %s283, 4
          %s296 = int_to_ptr.vmem [resolvable:$true] %s295
          %301 = dma.hbm_to_vmem [thread:$0]  %s294, 256, %s296, %s280, 128, 128, 8
        $region32: #{tpu_custom_call.1} parent=15 // pred_fallthru
          _
      $region16: #{tpu_custom_call.1} parent=5 // pred_fallthru
        _
      %p302 = scmp.le.s32.totalorder 1, %s24
      %p303 = scmp.lt.s32.totalorder %s24, 5
      %p304 = pnand %p302, %p303
      %p305 = pneg %p304
      // Predicated region
      $region33: #{tpu_custom_call.1} parent=5 // pred_check
        _
      $region34: #{tpu_custom_call.1} parent=5 // pred_check_branch
        %307 = sbr.rel (%p304) target = $region36
      $region35: #{tpu_custom_call.1} parent=5 // pred_region
        %s308 = ssub.s32 %s24, 1
        %s309 = sand.u32 %s95, 1
        %s310 = scalar_lea.sflag [#allocation8], %s309
        %s311 = sand.u32 %s95, 1
        %s312 = smul.addr %s311, 16
        %s313 = scalar_lea.vmem [#allocation7], %s312
        // Predicated region
        $region37: #{tpu_custom_call.1} parent=35 // pred_check
          %p314 = pneg %p108
        $region38: #{tpu_custom_call.1} parent=35 // pred_check_branch
          %316 = sbr.rel (%p314) target = $region40
        $region39: #{tpu_custom_call.1} parent=35 // pred_region
          %317 = dma.done %s310, 256
        $region40: #{tpu_custom_call.1} parent=35 // pred_fallthru
          _
        %s318 = sand.u32 %s29, 1
        %s319 = scalar_lea.sflag [#allocation11], %s318
        %s320 = sand.u32 %s125, 1
        %s321 = smul.addr %s320, 16
        %s322 = scalar_lea.vmem [#allocation10], %s321
        // Predicated region
        $region41: #{tpu_custom_call.1} parent=35 // pred_check
          %p323 = pneg %p138
        $region42: #{tpu_custom_call.1} parent=35 // pred_check_branch
          %325 = sbr.rel (%p323) target = $region44
        $region43: #{tpu_custom_call.1} parent=35 // pred_region
          %326 = dma.done %s319, 256
        $region44: #{tpu_custom_call.1} parent=35 // pred_fallthru
          _
        %s327 = sand.u32 %s29, 1
        %s328 = scalar_lea.sflag [#allocation11], %s327
        %s329 = sand.u32 %s155, 1
        %s330 = smul.addr %s329, 16
        %s331 = scalar_lea.vmem [#allocation12], %s330
        // Predicated region
        $region45: #{tpu_custom_call.1} parent=35 // pred_check
          %p332 = pneg %p168
        $region46: #{tpu_custom_call.1} parent=35 // pred_check_branch
          %334 = sbr.rel (%p332) target = $region48
        $region47: #{tpu_custom_call.1} parent=35 // pred_region
          %335 = dma.done %s328, 256
        $region48: #{tpu_custom_call.1} parent=35 // pred_fallthru
          _
        %p336 = scmp.lt.s32.totalorder %s35, 1
        %s337 = scalar_select %p336, %s35, 1
        %p338 = scmp.lt.s32.totalorder %s38, 0
        %s339 = scalar_select %p338, %s38, 0
        %s340 = sadd.s32 %s339, %s337
        %s341 = scalar_lea.vmem %s1, %s340
        %p342 = pneg %p78
        %p343 = pneg %p75
        %s344 = sand.u32 %s95, 1
        %s345 = scalar_lea.sflag [#allocation8], %s344
        %s346 = sand.u32 %s95, 1
        %s347 = smul.addr %s346, 16
        %s348 = scalar_lea.vmem [#allocation7], %s347
        %p349 = pneg %p108
        %p350 = pneg %p105
        %s351 = sand.u32 %s29, 1
        %s352 = scalar_lea.sflag [#allocation11], %s351
        %s353 = sand.u32 %s125, 1
        %s354 = smul.addr %s353, 16
        %s355 = scalar_lea.vmem [#allocation10], %s354
        %p356 = pneg %p138
        %p357 = pneg %p135
        %s358 = sand.u32 %s29, 1
        %s359 = scalar_lea.sflag [#allocation11], %s358
        %s360 = sand.u32 %s155, 1
        %s361 = smul.addr %s360, 16
        %s362 = scalar_lea.vmem [#allocation12], %s361
        %p363 = pneg %p168
        %p364 = pneg %p165
        %p365 = pneg %p198
        %p366 = pneg %p195
        %s367 = sand.u32 %s185, 1
        %s368 = scalar_lea.sflag [#allocation9], %s367
        %s369 = sand.u32 %s185, 1
        %s370 = smul.addr %s369, 16
        %s371 = scalar_lea.vmem [#allocation13], %s370
        %p372 = scmp.lt.s32.totalorder %s35, 1
        %s373 = scalar_select %p372, %s35, 1
        %p374 = scmp.lt.s32.totalorder %s38, 0
        %s375 = scalar_select %p374, %s38, 0
        %s376 = sadd.s32 %s375, %s373
        %s377 = scalar_lea.vmem %s1, %s376
        %s378 = smul.u32 2, %s37
        %s379 = smul.u32 2, %s38
        %s380 = smul.u32 2, %s38
        %s381 = smul.u32 2, %s37
        %p382 = scmp.eq.s32.totalorder %s38, 0
        // Predicated region
        $region49: #{tpu_custom_call.1} parent=35 // pred_check
          %p383 = pneg %p382
        $region50: #{tpu_custom_call.1} parent=35 // pred_check_branch
          %385 = sbr.rel (%p383) target = $region52
        $region51: #{tpu_custom_call.1} parent=35 // pred_region
          %vm386 = vcmask 7168
          %387 = vst.msk [vmem:[#allocation2] sm:$0xff] %vm386, -inf
          %388 = vst.msk [vmem:[#allocation2 + $0x8] sm:$0xff] %vm386, -inf
          %389 = vst.msk [vmem:[#allocation3] sm:$0xff] %vm386, 0.0
          %390 = vst.msk [vmem:[#allocation3 + $0x8] sm:$0xff] %vm386, 0.0
          %vm391 = vcmask 261120
          %392 = vst.msk [vmem:[#allocation4] sm:$0xff] %vm391, 0.0
          %393 = vst.msk [vmem:[#allocation4 + $0x8] sm:$0xff] %vm391, 0.0
        $region52: #{tpu_custom_call.1} parent=35 // pred_fallthru
          _
        %v394 = vld [vmem:[%s313] sm:$0xff]
        %v395 = vld [vmem:[%s313 + $0x8] sm:$0xff]
        %v396 = vmul.f32 %v394, 0.17677669
        %v397 = vmul.f32 %v395, 0.17677669
        %v398 = vld [vmem:[%s322] sm:$0xff]
        %v399 = vld [vmem:[%s322 + $0x8] sm:$0xff]
        %v400 = vld [vmem:[%s377] sm:$0x1]
        %v402 = vlaneseq
        %v403 = vshrl.u32 %v402, 7
        %v404 = vsub.s32 0, %v403
        %v405 = vrot.slane %v400, %v404
        %vm407 = vcmask 261120
        %v409 = vsel %vm407, %v396, 0
        %v412 = vsel %vm407, %v397, 0
        %v415 = vsel %vm407, %v398, 0
        %v418 = vsel %vm407, %v399, 0
        %420 = vmatprep.subr.mxu0 0.0
        %421 = vmatpush1.xpose.msra.mxu0 %v415
        %422 = vmatprep.subr.mxu0 0.0
        %423 = vmatpush1.xpose.msra.mxu0 %v418
        %424 = vmatprep.subr.mxu0 0.0
        %425 = vmatpush1.xpose.msra.mxu0 0.0
        %426 = vmatprep.subr.mxu0 0.0
        %427 = vmatpush1.xpose.msra.mxu0 0.0
        %428 = vmatprep.subr.mxu0 0.0
        %429 = vmatpush1.xpose.msra.mxu0 0.0
        %430 = vmatprep.subr.mxu0 0.0
        %431 = vmatpush1.xpose.msra.mxu0 0.0
        %432 = vmatprep.subr.mxu0 0.0
        %433 = vmatpush1.xpose.msra.mxu0 0.0
        %434 = vmatprep.subr.mxu0 0.0
        %435 = vmatpush1.xpose.msra.mxu0 0.0
        %436 = vmatprep.subr.mxu0 0.0
        %437 = vmatpush1.xpose.msra.mxu0 0.0
        %438 = vmatprep.subr.mxu0 0.0
        %439 = vmatpush1.xpose.msra.mxu0 0.0
        %440 = vmatprep.subr.mxu0 0.0
        %441 = vmatpush1.xpose.msra.mxu0 0.0
        %442 = vmatprep.subr.mxu0 0.0
        %443 = vmatpush1.xpose.msra.mxu0 0.0
        %444 = vmatprep.subr.mxu0 0.0
        %445 = vmatpush1.xpose.msra.mxu0 0.0
        %446 = vmatprep.subr.mxu0 0.0
        %447 = vmatpush1.xpose.msra.mxu0 0.0
        %448 = vmatprep.subr.mxu0 0.0
        %449 = vmatpush1.xpose.msra.mxu0 0.0
        %450 = vmatprep.subr.mxu0 0.0
        %451 = vmatpush1.xpose.msra.mxu0 0.0
        %452 = vmatprep.subr.mxu0 0.0
        %453 = vmatpush1.xpose.msra.mxu0 0.0
        %454 = vmatprep.subr.mxu0 0.0
        %455 = vmatpush1.xpose.msra.mxu0 0.0
        %456 = vmatprep.subr.mxu0 0.0
        %457 = vmatpush1.xpose.msra.mxu0 0.0
        %458 = vmatprep.subr.mxu0 0.0
        %459 = vmatpush1.xpose.msra.mxu0 0.0
        %460 = vmatprep.subr.mxu0 0.0
        %461 = vmatpush1.xpose.msra.mxu0 0.0
        %462 = vmatprep.subr.mxu0 0.0
        %463 = vmatpush1.xpose.msra.mxu0 0.0
        %464 = vmatprep.subr.mxu0 0.0
        %465 = vmatpush1.xpose.msra.mxu0 0.0
        %466 = vmatprep.subr.mxu0 0.0
        %467 = vmatpush1.xpose.msra.mxu0 0.0
        %468 = vmatprep.subr.mxu0 0.0
        %469 = vmatpush1.xpose.msra.mxu0 0.0
        %470 = vmatprep.subr.mxu0 0.0
        %471 = vmatpush1.xpose.msra.mxu0 0.0
        %472 = vmatprep.subr.mxu0 0.0
        %473 = vmatpush1.xpose.msra.mxu0 0.0
        %474 = vmatprep.subr.mxu0 0.0
        %475 = vmatpush1.xpose.msra.mxu0 0.0
        %476 = vmatprep.subr.mxu0 0.0
        %477 = vmatpush1.xpose.msra.mxu0 0.0
        %478 = vmatprep.subr.mxu0 0.0
        %479 = vmatpush1.xpose.msra.mxu0 0.0
        %480 = vmatprep.subr.mxu0 0.0
        %481 = vmatpush1.xpose.msra.mxu0 0.0
        %482 = vmatprep.subr.mxu0 0.0
        %483 = vmatpush1.xpose.msra.mxu0 0.0
        %484 = vmatprep.mubr.f32.mxu0 0.0
        %485 = vmatmul.mubr.f32.gmra.mrb[0].mxu0 %v409
        %v486 = vpop.f32.mrb[0].mxu0
        %v487 = vadd.f32 %v405, %v486
        %v488 = vpop.f32.mrb[0].mxu0
        %489 = vmatprep.mubr.f32.mxu0 0.0
        %490 = vmatmul.mubr.f32.gmra.mrb[0].mxu0 %v412
        %v491 = vpop.f32.mrb[0].mxu0
        %v492 = vadd.f32 %v405, %v491
        %v493 = vpop.f32.mrb[0].mxu0
        %494 = vdwg.mxu0
        %s495 = sld [smem:[#allocation6 + %s35]]
        %v496 = vlaneseq
        %v497 = vshrl.u32 %v496, 7
        %v498 = vadd.s32 %v497, 8
        %s499 = smul.u32 %s37, 16
        %v500 = vstv %s499
        %v501 = vadd.s32 %v500, %v497
        %v502 = vadd.s32 %v500, %v498
        %vm503 = vcmp.lt.s32.totalorder %v501, 0
        %v504 = vsub.s32 0, %v501
        %v505 = vsel %vm503, %v504, %v501
        %v506 = vshrl.u32 %v505, 3
        %v507 = vand.u32 %v505, 7
        %v508 = vsub.s32 0, %v507
        %v509 = vsel %vm503, %v508, %v507
        %vm510 = vcmp.lt.s32.totalorder %v502, 0
        %v511 = vsub.s32 0, %v502
        %v512 = vsel %vm510, %v511, %v502
        %v513 = vshrl.u32 %v512, 3
        %v514 = vand.u32 %v512, 7
        %v515 = vsub.s32 0, %v514
        %v516 = vsel %vm510, %v515, %v514
        %s517 = smul.u32 %s38, 16
        %v518 = vlaneseq
        %v519 = vand.u32 %v518, 127
        %v520 = vstv %s517
        %v521 = vadd.s32 %v520, %v519
        %s522 = ssub.s32 %s495, 8
        %v523 = vstv %s522
        %v524 = vadd.s32 %v509, %v523
        %v525 = vadd.s32 %v516, %v523
        %vm526 = vcmp.gt.s32.totalorder %v521, %v524
        %vm527 = vcmp.gt.s32.totalorder %v521, %v525
        %v528 = vsel %vm526, -10000.0, %v487
        %v529 = vsel %vm527, -10000.0, %v492
        %v530 = vld [vmem:[#allocation2] sm:$0xff]
        %v531 = vld [vmem:[#allocation2 + $0x8] sm:$0xff]
        %vm532 = vcmask 130048
        %v533 = vsel %vm532, %v528, -inf
        %534 = vmax.xlane.f32.xlu0 %v533
        %v535 = vpop.xlane.xlu0 %534
        %v536 = vsel %vm532, %v529, -inf
        %537 = vmax.xlane.f32.xlu0 %v536
        %v538 = vpop.xlane.xlu0 %537
        %v539 = vmax.f32 %v530, %v535
        %v540 = vmax.f32 %v531, %v538
        %v541 = vsub.f32 %v530, %v539
        %v542 = vsub.f32 %v531, %v540
        %v543 = vmul.f32 %v541, 1.442695
        %v544 = vpow.pop %v543
        %v545 = vmul.f32 %v542, 1.442695
        %v546 = vpow.pop %v545
        %548 = vset.pattern.permute.xlu0 0
        %549 = vperm.xlu0 %548, %v539
        %v550 = vpop.permute.xlu0 %549
        %553 = vset.pattern.permute.xlu0 0
        %554 = vperm.xlu0 %553, %v540
        %v555 = vpop.permute.xlu0 %554
        %v557 = vsub.f32 %v528, %v550
        %v558 = vsub.f32 %v529, %v555
        %v559 = vmul.f32 %v557, 1.442695
        %v560 = vpow.pop %v559
        %v561 = vmul.f32 %v558, 1.442695
        %v562 = vpow.pop %v561
        %v563 = vld [vmem:[#allocation3] sm:$0xff]
        %v564 = vld [vmem:[#allocation3 + $0x8] sm:$0xff]
        %v565 = vmul.f32 %v544, %v563
        %v566 = vmul.f32 %v546, %v564
        %v567 = vsel %vm532, %v560, 0.0
        %568 = vadd.xlane.f32.xlu0 %v567
        %v569 = vpop.xlane.xlu0 %568
        %v570 = vsel %vm532, %v562, 0.0
        %571 = vadd.xlane.f32.xlu0 %v570
        %v572 = vpop.xlane.xlu0 %571
        %v573 = vadd.f32 %v565, %v569
        %v574 = vadd.f32 %v566, %v572
        %vm575 = vcmask 7168
        %576 = vst.msk [vmem:[#allocation3] sm:$0xff] %vm575, %v573
        %577 = vst.msk [vmem:[#allocation3 + $0x8] sm:$0xff] %vm575, %v574
        %v578 = vld [vmem:[#allocation4] sm:$0xff]
        %v579 = vld [vmem:[#allocation4 + $0x8] sm:$0xff]
        %581 = vset.pattern.permute.xlu0 0
        %582 = vperm.xlu0 %581, %v544
        %v583 = vpop.permute.xlu0 %582
        %586 = vset.pattern.permute.xlu0 0
        %587 = vperm.xlu0 %586, %v546
        %v588 = vpop.permute.xlu0 %587
        %v590 = vmul.f32 %v583, %v578
        %v591 = vmul.f32 %v588, %v579
        %v592 = vld [vmem:[%s331] sm:$0xff]
        %v593 = vld [vmem:[%s331 + $0x8] sm:$0xff]
        %v595 = vsel %vm532, %v560, 0
        %v598 = vsel %vm532, %v562, 0
        %600 = vmatprep.subr.mxu0 0.0
        %601 = vmatpush1.msra.mxu0 %v592
        %602 = vmatprep.subr.mxu0 0.0
        %603 = vmatpush1.msra.mxu0 %v593
        %604 = vmatprep.subr.mxu0 0.0
        %605 = vmatpush1.msra.mxu0 0.0
        %606 = vmatprep.subr.mxu0 0.0
        %607 = vmatpush1.msra.mxu0 0.0
        %608 = vmatprep.subr.mxu0 0.0
        %609 = vmatpush1.msra.mxu0 0.0
        %610 = vmatprep.subr.mxu0 0.0
        %611 = vmatpush1.msra.mxu0 0.0
        %612 = vmatprep.subr.mxu0 0.0
        %613 = vmatpush1.msra.mxu0 0.0
        %614 = vmatprep.subr.mxu0 0.0
        %615 = vmatpush1.msra.mxu0 0.0
        %616 = vmatprep.subr.mxu0 0.0
        %617 = vmatpush1.msra.mxu0 0.0
        %618 = vmatprep.subr.mxu0 0.0
        %619 = vmatpush1.msra.mxu0 0.0
        %620 = vmatprep.subr.mxu0 0.0
        %621 = vmatpush1.msra.mxu0 0.0
        %622 = vmatprep.subr.mxu0 0.0
        %623 = vmatpush1.msra.mxu0 0.0
        %624 = vmatprep.subr.mxu0 0.0
        %625 = vmatpush1.msra.mxu0 0.0
        %626 = vmatprep.subr.mxu0 0.0
        %627 = vmatpush1.msra.mxu0 0.0
        %628 = vmatprep.subr.mxu0 0.0
        %629 = vmatpush1.msra.mxu0 0.0
        %630 = vmatprep.subr.mxu0 0.0
        %631 = vmatpush1.msra.mxu0 0.0
        %632 = vmatprep.subr.mxu0 0.0
        %633 = vmatpush1.msra.mxu0 0.0
        %634 = vmatprep.subr.mxu0 0.0
        %635 = vmatpush1.msra.mxu0 0.0
        %636 = vmatprep.subr.mxu0 0.0
        %637 = vmatpush1.msra.mxu0 0.0
        %638 = vmatprep.subr.mxu0 0.0
        %639 = vmatpush1.msra.mxu0 0.0
        %640 = vmatprep.subr.mxu0 0.0
        %641 = vmatpush1.msra.mxu0 0.0
        %642 = vmatprep.subr.mxu0 0.0
        %643 = vmatpush1.msra.mxu0 0.0
        %644 = vmatprep.subr.mxu0 0.0
        %645 = vmatpush1.msra.mxu0 0.0
        %646 = vmatprep.subr.mxu0 0.0
        %647 = vmatpush1.msra.mxu0 0.0
        %648 = vmatprep.subr.mxu0 0.0
        %649 = vmatpush1.msra.mxu0 0.0
        %650 = vmatprep.subr.mxu0 0.0
        %651 = vmatpush1.msra.mxu0 0.0
        %652 = vmatprep.subr.mxu0 0.0
        %653 = vmatpush1.msra.mxu0 0.0
        %654 = vmatprep.subr.mxu0 0.0
        %655 = vmatpush1.msra.mxu0 0.0
        %656 = vmatprep.subr.mxu0 0.0
        %657 = vmatpush1.msra.mxu0 0.0
        %658 = vmatprep.subr.mxu0 0.0
        %659 = vmatpush1.msra.mxu0 0.0
        %660 = vmatprep.subr.mxu0 0.0
        %661 = vmatpush1.msra.mxu0 0.0
        %662 = vmatprep.subr.mxu0 0.0
        %663 = vmatpush1.msra.mxu0 0.0
        %664 = vmatprep.mubr.f32.mxu0 0.0
        %665 = vmatmul.mubr.f32.gmra.mrb[0].mxu0 %v595
        %v666 = vpop.f32.mrb[0].mxu0
        %v667 = vadd.f32 0.0, %v666
        %v668 = vpop.f32.mrb[0].mxu0
        %669 = vmatprep.mubr.f32.mxu0 0.0
        %670 = vmatmul.mubr.f32.gmra.mrb[0].mxu0 %v598
        %v671 = vpop.f32.mrb[0].mxu0
        %v672 = vadd.f32 0.0, %v671
        %v673 = vpop.f32.mrb[0].mxu0
        %674 = vdwg.mxu0
        %v675 = vadd.f32 %v590, %v667
        %v676 = vadd.f32 %v591, %v672
        %677 = vst.msk [vmem:[#allocation4] sm:$0xff] %vm407, %v675
        %678 = vst.msk [vmem:[#allocation4 + $0x8] sm:$0xff] %vm407, %v676
        %679 = vst.msk [vmem:[#allocation2] sm:$0xff] %vm575, %v539
        %680 = vst.msk [vmem:[#allocation2 + $0x8] sm:$0xff] %vm575, %v540
        // Predicated region
        $region53: #{tpu_custom_call.1} parent=35 // pred_check
          %p681 = pneg %p382
        $region54: #{tpu_custom_call.1} parent=35 // pred_check_branch
          %683 = sbr.rel (%p681) target = $region56
        $region55: #{tpu_custom_call.1} parent=35 // pred_region
          %v684 = vld [vmem:[#allocation4] sm:$0xff]
          %v685 = vld [vmem:[#allocation4 + $0x8] sm:$0xff]
          %v686 = vld [vmem:[#allocation3] sm:$0xff]
          %v687 = vld [vmem:[#allocation3 + $0x8] sm:$0xff]
          %689 = vset.pattern.permute.xlu0 0
          %690 = vperm.xlu0 %689, %v686
          %v691 = vpop.permute.xlu0 %690
          %694 = vset.pattern.permute.xlu0 0
          %695 = vperm.xlu0 %694, %v687
          %v696 = vpop.permute.xlu0 %695
          %v698 = vrcp.pop %v691
          %v699 = vmul.f32 %v684, %v698
          %v700 = vrcp.pop %v696
          %v701 = vmul.f32 %v685, %v700
          %702 = vst.msk [vmem:[%s371] sm:$0xff] %vm407, %v699
          %703 = vst.msk [vmem:[%s371 + $0x8] sm:$0xff] %vm407, %v701
        $region56: #{tpu_custom_call.1} parent=35 // pred_fallthru
          _
        %s704 = sand.u32 %s185, 1
        %s705 = scalar_lea.sflag [#allocation9], %s704
        %s706 = sand.u32 %s185, 1
        %s707 = smul.addr %s706, 16
        %s708 = scalar_lea.vmem [#allocation13], %s707
        // Predicated region
        $region57: #{tpu_custom_call.1} parent=35 // pred_check
          %p709 = pneg %p195
        $region58: #{tpu_custom_call.1} parent=35 // pred_check_branch
          %711 = sbr.rel (%p709) target = $region60
        $region59: #{tpu_custom_call.1} parent=35 // pred_region
          %s712 = smul.u32 2, %s37
          %s714 = ssub.s32 256, 256
          %715 = vsyncadd %s705, %s714
          %s716 = smul.addr %s36, 2
          %s717 = sadd.s32 %s712, %s716
          %s718 = smul.addr %s35, 4
          %s719 = sadd.s32 %s717, %s718
          %s720 = smul.addr %s719, 128
          %s721 = scalar_lea.hbm %s5, %s720
          %s722 = sshll.u32 %s708, 4
          %s723 = int_to_ptr.vmem [resolvable:$true] %s722
          %728 = dma.vmem_to_hbm [thread:$0]  %s723, 256, %s721, %s705, 128, 128, 8
        $region60: #{tpu_custom_call.1} parent=35 // pred_fallthru
          _
      $region36: #{tpu_custom_call.1} parent=5 // pred_fallthru
        _
      %p729 = scmp.le.s32.totalorder 2, %s24
      // Predicated region
      $region61: #{tpu_custom_call.1} parent=5 // pred_check
        %p730 = pneg %p729
      $region62: #{tpu_custom_call.1} parent=5 // pred_check_branch
        %732 = sbr.rel (%p730) target = $region64
      $region63: #{tpu_custom_call.1} parent=5 // pred_region
        %s733 = ssub.s32 %s24, 2
        // Predicated region
        $region65: #{tpu_custom_call.1} parent=63 // pred_check
          %p734 = pneg %p201
        $region66: #{tpu_custom_call.1} parent=63 // pred_check_branch
          %736 = sbr.rel (%p734) target = $region68
        $region67: #{tpu_custom_call.1} parent=63 // pred_region
          %s737 = sand.u32 %s186, 1
          %s738 = scalar_lea.sflag [#allocation9], %s737
          %s739 = sand.u32 %s186, 1
          %s740 = smul.addr %s739, 16
          %s741 = scalar_lea.vmem [#allocation13], %s740
          %742 = dma.done %s738, 256
        $region68: #{tpu_custom_call.1} parent=63 // pred_fallthru
          _
      $region64: #{tpu_custom_call.1} parent=5 // pred_fallthru
        _
    $region6: #{tpu_custom_call.1} parent=1 // loop_footer
      %s28 = sadd.s32 1, %s24
    $region7: #{tpu_custom_call.1} parent=1 // loop_footer_branch
      %23 = sbr.rel target = $region3
    $region8: #{tpu_custom_call.1} parent=1 // loop_exit
      _
    %743 = vsyncpa [#allocation8], 1
    %s744 = scalar_lea.sflag [#allocation8], 1
    %745 = vsyncpa %s744, 1
    %746 = vsyncpa [#allocation11], 1
    %s747 = scalar_lea.sflag [#allocation11], 1
    %748 = vsyncpa %s747, 1
    %749 = vsyncpa [#allocation9], 1
    %s750 = scalar_lea.sflag [#allocation9], 1
    %751 = vsyncpa %s750, 1

</llo_original>
